<compile_context>
chip_gen: v5e
topology: v5e:2x2
jax: 0.10.0
libtpu: 0.0.40
codegen_flags: <defaults>
</compile_context>

<pallas_src>
import math
import numpy as np
import jax
import jax.numpy as jnp
from jax.experimental import pallas as pl
from jax.experimental.pallas import tpu as pltpu


# ----------------------------- memory plan ----------------------------------

def _round_up(x, m):
    return ((x + m - 1) // m) * m


def _tpu_memory_plan():
    """Generation-aware VMEM budget / pipelining depth / default row-tile."""
    cap = 64 * 1024 * 1024  # conservative default = v7x physical VMEM per TC
    try:
        cap = int(pltpu.get_tpu_info().vmem_capacity_bytes)
    except Exception:
        pass
    if cap >= 96 * 1024 * 1024:
        # v5e / v6e: 128 MiB physical -> big budget, deeper activation buffering, bigger TM
        return 96 * 1024 * 1024, 3, 512
    # v7x: 64 MiB physical -> leave headroom for compiler scratch + streaming buffers
    return max(cap - 24 * 1024 * 1024, 32 * 1024 * 1024), 2, 256


VMEM_LIMIT_BYTES, ACT_BUFFERS, DEFAULT_TM = _tpu_memory_plan()

# torch nn.GELU default is exact (erf).  Set True to use the tanh approximation,
# which maps onto the EUP slot on v6e (deliberate numerics deviation if enabled).
GELU_APPROXIMATE = False


# ----------------------------- Pallas kernels ------------------------------

def _linear_kernel(x_ref, w_ref, b_ref, o_ref):
    # y = x @ W + b   (PyTorch nn.Linear; W stored [in, out]; bf16 MXU, f32 acc)
    y = jnp.dot(x_ref[...], w_ref[...], preferred_element_type=jnp.float32)
    o_ref[...] = (y + b_ref[...]).astype(o_ref.dtype)


def _mlp_gelu_kernel(x_ref, w1_ref, b1_ref, w2_ref, b2_ref, o_ref):
    # Linear -> GELU -> Linear (projector depth == 2)
    h = jnp.dot(x_ref[...], w1_ref[...], preferred_element_type=jnp.float32) + b1_ref[...]
    h = jax.nn.gelu(h, approximate=GELU_APPROXIMATE)
    y = jnp.dot(h.astype(w2_ref.dtype), w2_ref[...],
                preferred_element_type=jnp.float32) + b2_ref[...]
    o_ref[...] = y.astype(o_ref.dtype)


def _pick_tm(M, tm=DEFAULT_TM):
    """Row tile: multiple of 16 (bf16 sublane packing), never larger than M, and
    split so the grid has >=2 steps when M allows (v7x megacore sharding)."""
    if M < 16:
        return M if (M % 8 == 0 or M < 8) else 8
    tm = min(tm, (M // 16) * 16)
    if pl.cdiv(M, tm) < 2 and M >= 32:
        tm = min(_round_up(pl.cdiv(M, 2), 16), (M // 16) * 16)
    return tm


def _stream_spec(shape, index_map):
    """Activation stream spec; deeper pipelining where VMEM allows (v5e/v6e)."""
    if ACT_BUFFERS == 2:
        return pl.BlockSpec(shape, index_map)
    return pl.BlockSpec(shape, index_map, pipeline_mode=pl.Buffered(ACT_BUFFERS))


def _resident_spec(shape):
    """Constant-index weights/bias: fetched once, single-buffered (halves resident VMEM)."""
    return pl.BlockSpec(shape, lambda *_: (0,) * len(shape),
                        pipeline_mode=pl.Buffered(1))


def pallas_linear(x, w, b, *, out_dtype=jnp.bfloat16, tm=DEFAULT_TM):
    """y = x @ w + b.  M-tiled (ragged tail masked by Pallas); weights VMEM-resident."""
    M, K = x.shape
    Kw, N = w.shape
    assert K == Kw and K % 128 == 0 and N % 128 == 0, (K, N)
    tm = _pick_tm(M, tm)
    out_bytes = jnp.dtype(out_dtype).itemsize
    cost = pl.CostEstimate(
        flops=int(2 * M * K * N),
        transcendentals=0,
        bytes_accessed=int(M * K * 2 + K * N * 2 + N * 4 + M * N * out_bytes))
    return pl.pallas_call(
        _linear_kernel,
        out_shape=jax.ShapeDtypeStruct((M, N), out_dtype),
        grid=(pl.cdiv(M, tm),),                      # ragged last tile handled by Pallas
        in_specs=[_stream_spec((tm, K), lambda i: (i, 0)),
                  _resident_spec((K, N)),
                  _resident_spec((1, N))],
        out_specs=pl.BlockSpec((tm, N), lambda i: (i, 0)),
        compiler_params=pltpu.CompilerParams(
            dimension_semantics=("parallel",),       # megacore-shard M on v7x
            vmem_limit_bytes=VMEM_LIMIT_BYTES),
        cost_estimate=cost,
    )(x.astype(jnp.bfloat16), w.astype(jnp.bfloat16), b.astype(jnp.float32).reshape(1, N))


def pallas_mlp_gelu(x, w1, b1, w2, b2, *, out_dtype=jnp.float32, tm=DEFAULT_TM):
    """Linear -> GELU -> Linear.  M-tiled; both weights VMEM-resident (single-buffered)."""
    M, K = x.shape
    H = w1.shape[1]
    N = w2.shape[1]
    assert w1.shape[0] == K and w2.shape[0] == H
    assert K % 128 == 0 and H % 128 == 0 and N % 128 == 0, (K, H, N)
    # TODO(synk): at real DeepseekVL2 projector sizes on v7x, add an optional K grid
    # axis with an f32 accumulator when (K*H + H*N)*2 bytes exceeds the VMEM budget.
    tm = _pick_tm(M, tm)
    out_bytes = jnp.dtype(out_dtype).itemsize
    cost = pl.CostEstimate(
        flops=int(2 * M * K * H + 2 * M * H * N),
        transcendentals=int(M * H),
        bytes_accessed=int(M * K * 2 + (K * H + H * N) * 2 + (H + N) * 4 + M * N * out_bytes))
    return pl.pallas_call(
        _mlp_gelu_kernel,
        out_shape=jax.ShapeDtypeStruct((M, N), out_dtype),
        grid=(pl.cdiv(M, tm),),
        in_specs=[_stream_spec((tm, K), lambda i: (i, 0)),
                  _resident_spec((K, H)),
                  _resident_spec((1, H)),
                  _resident_spec((H, N)),
                  _resident_spec((1, N))],
        out_specs=pl.BlockSpec((tm, N), lambda i: (i, 0)),
        compiler_params=pltpu.CompilerParams(
            dimension_semantics=("parallel",),
            vmem_limit_bytes=VMEM_LIMIT_BYTES),
        cost_estimate=cost,
    )(x.astype(jnp.bfloat16), w1.astype(jnp.bfloat16), b1.astype(jnp.float32).reshape(1, H),
      w2.astype(jnp.bfloat16), b2.astype(jnp.float32).reshape(1, N))


# ------------------------------- model glue --------------------------------

CFG = dict(
    patch_size=4,        # vision_config.patch_size (small synthetic)
    input_dim=64,        # projector_config.input_dim (vision feature dim)
    n_embed=32,          # projector_config.n_embed == language hidden size
    mlp_ratio=2,         # projector_config.mlp_ratio
    depth=2,             # projector_config.depth  (-> 2 linears, 1 GELU)
    downsample_ratio=2,  # projector_config.downsample_ratio
    vocab_size=128,
    tile_tag='2D',
    global_view_pos='head',
)


def init_params(key, cfg):
    """Reference (torch-layout) parameters."""
    ks = jax.random.split(key, 8)
    pd = 3 * cfg['patch_size'] ** 2
    d, ne, mr, ds = cfg['input_dim'], cfg['n_embed'], cfg['mlp_ratio'], cfg['downsample_ratio']
    std = 0.02
    embed_std = 1.0 / float(np.sqrt(ne))
    return dict(
        vision_w=jax.random.normal(ks[0], (pd, d), jnp.float32) * std,
        vision_b=jnp.zeros((d,), jnp.float32),
        # proj_w1 rows follow torch F.unfold feature order (c, i, j)
        proj_w1=jax.random.normal(ks[1], (d * ds * ds, ne * mr), jnp.float32) * std,
        proj_b1=jax.random.normal(ks[2], (ne * mr,), jnp.float32) * std,
        proj_w2=jax.random.normal(ks[3], (ne * mr, ne), jnp.float32) * std,
        proj_b2=jax.random.normal(ks[4], (ne,), jnp.float32) * std,
        image_newline=jax.random.normal(ks[5], (ne,), jnp.float32) * embed_std,
        view_seperator=jax.random.normal(ks[6], (ne,), jnp.float32) * embed_std,
        embed_tokens=jax.random.normal(ks[7], (cfg['vocab_size'], ne), jnp.float32) * std,
    )


def prepare_tpu_params(params, cfg):
    """One-time TPU layout prep: pad every lane dim to 128 (zero-padded -> exact math),
    permute proj_w1 rows to the feature-innermost unfold order, cast weights to bf16,
    and pad the embedding table / newline / separator so the whole stitching path
    stays lane-dense at 128 lanes."""
    assert cfg['depth'] == 2  # TODO(synk): depth>2 adds extra GELU+Linear(ne*mr) blocks.
    p, d, ne = cfg['patch_size'], cfg['input_dim'], cfg['n_embed']
    mr, ds = cfg['mlp_ratio'], cfg['downsample_ratio']
    K_vis = 3 * p * p
    Kp_vis = _round_up(K_vis, 128)
    Dp = _round_up(d, 128)
    Hh = ne * mr
    Hp = _round_up(Hh, 128)
    Np = _round_up(ne, 128)

    vw = jnp.pad(params['vision_w'], ((0, Kp_vis - K_vis), (0, Dp - d)))
    vb = jnp.pad(params['vision_b'], (0, Dp - d))

    # torch F.unfold produces feature order (c, i, j); the kernel consumes (i, j, c)
    # so activations keep the feature dim lane-contiguous. Permute the weight once.
    w1 = params['proj_w1'].reshape(d, ds, ds, Hh)        # (c, i, j, H)
    w1 = jnp.transpose(w1, (1, 2, 0, 3))                 # (i, j, c, H)
    w1 = jnp.pad(w1, ((0, 0), (0, 0), (0, Dp - d), (0, Hp - Hh)))
    w1 = w1.reshape(ds * ds * Dp, Hp)
    b1 = jnp.pad(params['proj_b1'], (0, Hp - Hh))

    w2 = jnp.pad(params['proj_w2'], ((0, Hp - Hh), (0, Np - ne)))
    b2 = jnp.pad(params['proj_b2'], (0, Np - ne))

    return dict(
        vision_w=vw.astype(jnp.bfloat16), vision_b=vb.astype(jnp.float32),
        proj_w1=w1.astype(jnp.bfloat16), proj_b1=b1.astype(jnp.float32),
        proj_w2=w2.astype(jnp.bfloat16), proj_b2=b2.astype(jnp.float32),
        vis_k=K_vis, vis_kp=Kp_vis, dp=Dp, ne=ne, ne_pad=Np,
        image_newline=jnp.pad(params['image_newline'], (0, Np - ne)),
        view_seperator=jnp.pad(params['view_seperator'], (0, Np - ne)),
        embed_tokens=jnp.pad(params['embed_tokens'], ((0, 0), (0, Np - ne))),
    )


def encode_images(tp, cfg, tiles):
    """vision.forward_features (stand-in patch-embed) + MlpProjector('downsample_mlp_gelu').

    tiles: [n_tiles, 3, H, W] (NCHW).  Returns [n_tiles, H2*W2, ne_pad] where lanes
    beyond n_embed are exact zeros (lane padding)."""
    tiles = tiles.astype(jnp.bfloat16)
    n, c, H, W = tiles.shape
    p, ds = cfg['patch_size'], cfg['downsample_ratio']
    Hp_, Wp_ = H // p, W // p
    dp = tp['dp']

    if Hp_ % ds == 0 and Wp_ % ds == 0:
        # Fused layout: patchify rows in (tile, h2, w2, i, j) order so the projector's
        # ds x ds unfold is just a contiguous reshape of the bf16 patch-embed output.
        H2, W2 = Hp_ // ds, Wp_ // ds
        x = tiles.reshape(n, c, H2, ds, p, W2, ds, p)     # n c h2 i pi w2 j pj
        x = x.transpose(0, 2, 5, 3, 6, 1, 4, 7)           # n h2 w2 i j c pi pj
        x = x.reshape(n * H2 * W2 * ds * ds, c * p * p)
        x = jnp.pad(x, ((0, 0), (0, tp['vis_kp'] - tp['vis_k'])))
        feat = pallas_linear(x, tp['vision_w'], tp['vision_b'], out_dtype=jnp.bfloat16)
        xu = feat.reshape(n * H2 * W2, ds * ds * dp)      # contiguous; no transpose
    else:
        # TODO(synk): non-divisible patch grids (e.g. SigLIP 27x27) use the unfused
        # path: zero-feature spatial pad + unfold transpose between the two kernels.
        x = tiles.reshape(n, c, Hp_, p, Wp_, p).transpose(0, 2, 4, 1, 3, 5)
        x = x.reshape(n * Hp_ * Wp_, c * p * p)
        x = jnp.pad(x, ((0, 0), (0, tp['vis_kp'] - tp['vis_k'])))
        feat = pallas_linear(x, tp['vision_w'], tp['vision_b'], out_dtype=jnp.bfloat16)
        feat = feat.reshape(n, Hp_, Wp_, dp)
        pad = (ds - Hp_ % ds) % ds
        if pad > 0:
            feat = jnp.pad(feat, ((0, 0), (0, pad), (0, pad), (0, 0)))
        H2, W2 = (Hp_ + pad) // ds, (Wp_ + pad) // ds
        xu = feat.reshape(n, H2, ds, W2, ds, dp).transpose(0, 1, 3, 2, 4, 5)
        xu = xu.reshape(n * H2 * W2, ds * ds * dp)

    y = pallas_mlp_gelu(xu, tp['proj_w1'], tp['proj_b1'], tp['proj_w2'], tp['proj_b2'])
    return y.reshape(n, H2 * W2, tp['ne_pad'])            # keep lane-dense padded width


def _embed_lookup_padded(tp, input_ids):
    # lane-dense (128-wide padded) embedding lookup; padded lanes are exact zeros
    return tp['embed_tokens'][input_ids]


def prepare_inputs_embeds(tp, cfg, input_ids, images, images_seq_mask, images_spatial_crop):
    """Mirrors DeepseekVLV2ForCausalLM.prepare_inputs_embeds (tile_tag='2D').

    Stitching and masked_scatter are done at the lane-dense padded width (ne_pad);
    the result is stripped to n_embed exactly once at the end."""
    ne = tp['ne']
    if images is None:
        return _embed_lookup_padded(tp, input_ids)[..., :ne]
    crops = np.asarray(images_spatial_crop)               # one host copy, no per-element sync
    if int(crops.sum()) == 0:
        return _embed_lookup_padded(tp, input_ids)[..., :ne]

    bs, max_n_images, _ = crops.shape
    batch_num_tiles = [0] * bs
    total_tiles = []
    for idx in range(bs):
        for jdx in range(max_n_images):
            nw, nh = int(crops[idx, jdx, 0]), int(crops[idx, jdx, 1])
            if nw == 0 or nh == 0:
                break
            batch_num_tiles[idx] += 1 + nw * nh
        total_tiles.append(images[idx, :batch_num_tiles[idx]])
    total_tiles = jnp.concatenate(total_tiles, axis=0)
    assert total_tiles.shape[0] == sum(batch_num_tiles)
    if total_tiles.shape[0] == 0:
        return _embed_lookup_padded(tp, input_ids)[..., :ne]

    images_embeds = encode_images(tp, cfg, total_tiles)   # [tiles, hw, ne_pad]
    _, hw, n_dim = images_embeds.shape
    h = w = math.isqrt(hw)
    assert h * w == hw

    input_embeds = _embed_lookup_padded(tp, input_ids)    # [bs, T, ne_pad]
    newline, sep = tp['image_newline'], tp['view_seperator']
    mask_np = np.asarray(images_seq_mask)

    tile_index = 0
    out_embeds = []
    for idx in range(bs):
        images_in_this_batch = []
        for jdx in range(max_n_images):
            nw, nh = int(crops[idx, jdx, 0]), int(crops[idx, jdx, 1])
            if nw == 0 or nh == 0:
                break
            num_tiles_in_image = nw * nh
            gf = images_embeds[tile_index]
            lf = images_embeds[tile_index + 1: tile_index + 1 + num_tiles_in_image]
            tile_index += num_tiles_in_image + 1

            # --- 2D tile tag ---
            gf = gf.reshape(h, w, n_dim)
            nl_g = jnp.broadcast_to(newline[None, None, :], (h, 1, n_dim))
            gf = jnp.concatenate([gf, nl_g], axis=1).reshape(-1, n_dim)

            # rearrange '(th tw) (h w) d -> (th h) (tw w) d'
            lf = lf.reshape(nh, nw, h, w, n_dim).transpose(0, 2, 1, 3, 4)
            lf = lf.reshape(nh * h, nw * w, n_dim)
            nl_l = jnp.broadcast_to(newline[None, None, :], (nh * h, 1, n_dim))
            lf = jnp.concatenate([lf, nl_l], axis=1).reshape(-1, n_dim)

            if cfg['global_view_pos'] == 'head':
                glf = jnp.concatenate([gf, sep[None, :], lf], axis=0)
            else:
                glf = jnp.concatenate([lf, sep[None, :], gf], axis=0)
            images_in_this_batch.append(glf)

        emb = input_embeds[idx]
        if images_in_this_batch:
            img_feats = jnp.concatenate(images_in_this_batch, axis=0).astype(emb.dtype)
            n_masked = int(mask_np[idx].sum())
            assert n_masked == img_feats.shape[0], (
                f"masked_scatter size mismatch: mask={n_masked}, feats={img_feats.shape[0]}")
            m = jnp.asarray(mask_np[idx])
            gidx = jnp.clip(jnp.cumsum(m.astype(jnp.int32)) - 1, 0, img_feats.shape[0] - 1)
            # masked_scatter_: masked positions take image features sequentially
            emb = jnp.where(m[:, None], img_feats[gidx], emb)
        out_embeds.append(emb)
    # strip lane padding once, at the very end of the embed-preparation path
    return jnp.stack(out_embeds, axis=0)[..., :ne]


def forward(tp, cfg, input_ids, position_ids=None, past_key_values=None,
            attn_metadata=None, pixel_values=None, image_mask=None,
            images_spatial_crop=None, inputs_embeds=None, **kwargs):
    if inputs_embeds is None and pixel_values is not None:
        inputs_embeds = prepare_inputs_embeds(
            tp, cfg,
            input_ids=input_ids,
            images=pixel_values,
            images_seq_mask=image_mask,
            images_spatial_crop=images_spatial_crop)
    # TODO(synk): self.language (DeepseekV2ForCausalLM) is not implemented; return
    # the prepared inputs_embeds as the hidden states.
    return inputs_embeds


# ---------------------------------- main ------------------------------------

if __name__ == "__main__":
    cfg = CFG
    key = jax.random.PRNGKey(0)
    kp, ki, kid = jax.random.split(key, 3)
    params = init_params(kp, cfg)
    tparams = prepare_tpu_params(params, cfg)   # one-time pad/permute/bf16 cast

    bs, T = 1, 24
    img_size = 16
    # crops: 1 image with 2x1 local tiles -> 1 global + 2 local = 3 tiles
    images_spatial_crop = np.array([[[2, 1]]], dtype=np.int64)
    n_tiles = 3
    # images: [b, max_tiles, 3, H, W]  (NCHW per tile)
    pixel_values = jax.random.normal(ki, (bs, n_tiles, 3, img_size, img_size), jnp.float32)

    input_ids = jax.random.randint(kid, (bs, T), 0, cfg['vocab_size'])

    # vision: 16x16/patch4 -> 4x4 patches; downsample_ratio=2 -> h=w=2 per tile.
    # image tokens per image (2D tag, head): h*(w+1) + 1 + (nh*h)*(nw*w+1) = 6+1+10 = 17
    num_image_tokens = 17
    mask_np = np.zeros((bs, T), dtype=bool)
    mask_np[0, 2:2 + num_image_tokens] = True
    image_mask = jnp.asarray(mask_np)

    hidden = forward(
        tparams, cfg,
        input_ids=input_ids,
        position_ids=jnp.arange(T)[None, :],
        past_key_values=None,
        pixel_values=pixel_values,
        image_mask=image_mask,
        images_spatial_crop=images_spatial_crop,
    )
    hidden = jax.block_until_ready(hidden)
    assert hidden.shape == (bs, T, cfg['n_embed'])
    assert np.all(np.isfinite(np.asarray(hidden)))
    print("KERNEL_OK")
</pallas_src>

<mosaic_0001>
module attributes {stable_mosaic.version = 11 : i64} {
  func.func @_linear_kernel(%arg0: i32, %arg1: memref<32x128xbf16, #tpu.memory_space<vmem>>, %arg2: memref<128x128xbf16, #tpu.memory_space<vmem>>, %arg3: memref<1x128xf32, #tpu.memory_space<vmem>>, %arg4: memref<32x128xbf16, #tpu.memory_space<vmem>>) attributes {dimension_semantics = [#tpu.dimension_semantics<parallel>], iteration_bounds = array<i64: 2>, scalar_prefetch = 0 : i64, scratch_operands = 0 : i64, tpu.core_type = #tpu.core_type<tc>, window_params = [{transform_indices = @transform_0, window_bounds = array<i64: 32, 128>}, {pipeline_mode = #tpu.pipeline_mode<synchronous>, transform_indices = @transform_1, window_bounds = array<i64: 128, 128>}, {pipeline_mode = #tpu.pipeline_mode<synchronous>, transform_indices = @transform_2, window_bounds = array<i64: 1, 128>}, {transform_indices = @transform_3, window_bounds = array<i64: 32, 128>}]} {
    %c0 = arith.constant 0 : index
    %c0_0 = arith.constant 0 : index
    %0 = vector.load %arg1[%c0, %c0_0] : memref<32x128xbf16, #tpu.memory_space<vmem>>, vector<32x128xbf16>
    %c0_1 = arith.constant 0 : index
    %c0_2 = arith.constant 0 : index
    %1 = vector.load %arg2[%c0_1, %c0_2] : memref<128x128xbf16, #tpu.memory_space<vmem>>, vector<128x128xbf16>
    %cst = arith.constant dense<0.000000e+00> : vector<32x128xf32>
    %2 = tpu.matmul %0, %1, %cst {dimension_numbers = #tpu.dot_dimension_numbers<[1], [0], [0], [1], [0, 0, 1, 1], [], []>} : vector<32x128xbf16>, vector<128x128xbf16>, vector<32x128xf32> -> vector<32x128xf32>
    %c0_3 = arith.constant 0 : index
    %c0_4 = arith.constant 0 : index
    %3 = vector.load %arg3[%c0_3, %c0_4] : memref<1x128xf32, #tpu.memory_space<vmem>>, vector<1x128xf32>
    %4 = vector.broadcast %3 : vector<1x128xf32> to vector<32x128xf32>
    %5 = arith.addf %2, %4 : vector<32x128xf32>
    %6 = arith.truncf %5 : vector<32x128xf32> to vector<32x128xbf16>
    %c0_5 = arith.constant 0 : index
    %c0_6 = arith.constant 0 : index
    %7 = vector.load %arg4[%c0_5, %c0_6] : memref<32x128xbf16, #tpu.memory_space<vmem>>, vector<32x128xbf16>
    tpu.vector_store %arg4[%c0_5, %c0_6], %6 {strides = array<i32>} : memref<32x128xbf16, #tpu.memory_space<vmem>>, vector<32x128xbf16>,
    return
  }
  func.func @transform_0(%arg0: i32) -> (i32, i32) {
    %c0_i32 = arith.constant 0 : i32
    %c0_i32_0 = arith.constant 0 : i32
    return %arg0, %c0_i32 : i32, i32
  }
  func.func @transform_1(%arg0: i32) -> (i32, i32) {
    %c0_i32 = arith.constant 0 : i32
    %c0_i32_0 = arith.constant 0 : i32
    %c0_i32_1 = arith.constant 0 : i32
    return %c0_i32, %c0_i32_0 : i32, i32
  }
  func.func @transform_2(%arg0: i32) -> (i32, i32) {
    %c0_i32 = arith.constant 0 : i32
    %c0_i32_0 = arith.constant 0 : i32
    %c0_i32_1 = arith.constant 0 : i32
    return %c0_i32, %c0_i32_0 : i32, i32
  }
  func.func @transform_3(%arg0: i32) -> (i32, i32) {
    %c0_i32 = arith.constant 0 : i32
    %c0_i32_0 = arith.constant 0 : i32
    return %arg0, %c0_i32 : i32, i32
  }
}

</mosaic_0001>

<llo_original>
// kernel: tpu_custom_call.1
$region0: #{tpu_custom_call.1}
  #allocation0 [shape = 'u32[]', space=smem, size = 0x4, offset = 0x4, fixed_abs, tag = 'smem constant byte address 0x4 - core index']
  #allocation1 [shape = 'u32[72,128]{1,0:T(1,128)}', space=vmem, size = 0x9000, scoped, tag = 'internal scratch']
  %s0 = inlined_call_operand.hbm [shape: bf16[48,128], index: 0, kind: input, shape index: {}]
  %s1 = inlined_call_operand.hbm [shape: bf16[128,128], index: 1, kind: input, shape index: {}]
  %s2 = inlined_call_operand.vmem [shape: f32[1,128], index: 2, kind: input, shape index: {}]
  %s3 = inlined_call_operand.hbm [shape: bf16[48,128], index: 3, kind: output, shape index: {}]
  %s4 = sld [smem:[#allocation0]]
  $region53: #{tpu_custom_call.1} parent=0
    _
  %s6 = ssub.s32 1, %s4
  %s7 = scalar_select 0, %s6, %s4
  $region1: #{tpu_custom_call.1} parent=0
    #allocation2 [shape = 'u8[16384]{0}', space=vmem, size = 0x4000, scoped, tag = 'input window, operand 0']
    #allocation3 [shape = 's32[2]{0}', space=sflag, size = 0x8, scoped, tag = 'scoped memory for tpu_custom_call.1']
    #allocation4 [shape = 's32[2]{0}', space=sflag, size = 0x8, scoped, tag = 'scoped memory for tpu_custom_call.1']
    #allocation5 [shape = 'u8[32768]{0}', space=vmem, size = 0x8000, scoped, tag = 'input window, operand 1, single buffered']
    #allocation6 [shape = 's32[1]{0}', space=sflag, size = 0x4, scoped, tag = 'scoped memory for tpu_custom_call.1']
    #allocation7 [shape = 'u8[16384]{0}', space=vmem, size = 0x4000, scoped, tag = 'output window, operand 0']
    %8 = vsyncpa [#allocation3], 0
    %s9 = scalar_lea.sflag [#allocation3], 1
    %10 = vsyncpa %s9, 0
    %11 = vsyncpa [#allocation6], 0
    %12 = vsyncpa [#allocation4], 0
    %s13 = scalar_lea.sflag [#allocation4], 1
    %14 = vsyncpa %s13, 0
    loop: start=0, step=1, limit=4
    $region2: #{tpu_custom_call.1} parent=1 // loop_pre_header
      _
    $region3: #{tpu_custom_call.1} parent=1 // loop_header
      %s16 = sphi 0, %s20
      %p17 = scmp.ge.s32.totalorder %s16, 4
      %s26 = sphi 0, %s28
      %s29 = sphi 0, %s26
      %s30 = sphi 0, %s29
      %s46 = sphi 0, %s30
      %s50 = sphi 0, %s50
      %s52 = sphi 0, %s50
      %s53 = sphi 0, %s52
      %s67 = sphi 0, %s53
      %s71 = sphi 0, %s71
      %s73 = sphi 0, %s71
      %s74 = sphi 0, %s73
      %s88 = sphi 0, %s74
      %s94 = sphi 0, %s96
      %s97 = sphi 0, %s94
      %s98 = sphi 0, %s97
      %s114 = sphi 0, %s98
    $region4: #{tpu_custom_call.1} parent=1 // loop_header_branch
      %19 = sbr.rel (%p17) target = $region8
    $region5: #{tpu_custom_call.1} parent=1 // loop_body
      %s21 = ssub.s32 %s16, 1
      %s22 = ssub.s32 %s16, 2
      %s23 = sadd.s32 %s16, 1
      %s24 = ssub.s32 %s16, %s23
      %p25 = scmp.eq.s32.totalorder %s24, 0
      %s27 = sadd.s32 %s26, 1
      %s28 = scalar_select %p25, %s26, %s27
      %p31 = pneg %p25
      %p32 = scmp.eq.s32.totalorder %s16, 1
      %p33 = por %p31, %p32
      %p34 = scmp.ne.s32.totalorder %s26, %s29
      %p35 = scmp.eq.s32.totalorder %s16, 0
      %p36 = por %p34, %p35
      %p37 = scmp.ne.s32.totalorder %s26, %s29
      %p38 = scmp.eq.s32.totalorder %s21, 1
      %p39 = por %p37, %p38
      %p40 = scmp.ne.s32.totalorder %s29, %s30
      %p41 = scmp.eq.s32.totalorder %s21, 0
      %p42 = por %p40, %p41
      %p43 = scmp.ne.s32.totalorder %s29, %s30
      %p44 = scmp.eq.s32.totalorder %s22, 1
      %p45 = por %p43, %p44
      %p47 = scmp.ne.s32.totalorder %s30, %s46
      %p48 = scmp.eq.s32.totalorder %s22, 0
      %p49 = por %p47, %p48
      %s51 = sadd.s32 %s50, 1
      %p54 = scmp.eq.s32.totalorder %s16, 1
      %p55 = scmp.ne.s32.totalorder %s50, %s52
      %p56 = scmp.eq.s32.totalorder %s16, 0
      %p57 = por %p55, %p56
      %p58 = scmp.ne.s32.totalorder %s50, %s52
      %p59 = scmp.eq.s32.totalorder %s21, 1
      %p60 = por %p58, %p59
      %p61 = scmp.ne.s32.totalorder %s52, %s53
      %p62 = scmp.eq.s32.totalorder %s21, 0
      %p63 = por %p61, %p62
      %p64 = scmp.ne.s32.totalorder %s52, %s53
      %p65 = scmp.eq.s32.totalorder %s22, 1
      %p66 = por %p64, %p65
      %p68 = scmp.ne.s32.totalorder %s53, %s67
      %p69 = scmp.eq.s32.totalorder %s22, 0
      %p70 = por %p68, %p69
      %s72 = sadd.s32 %s71, 1
      %p75 = scmp.eq.s32.totalorder %s16, 1
      %p76 = scmp.ne.s32.totalorder %s71, %s73
      %p77 = scmp.eq.s32.totalorder %s16, 0
      %p78 = por %p76, %p77
      %p79 = scmp.ne.s32.totalorder %s71, %s73
      %p80 = scmp.eq.s32.totalorder %s21, 1
      %p81 = por %p79, %p80
      %p82 = scmp.ne.s32.totalorder %s73, %s74
      %p83 = scmp.eq.s32.totalorder %s21, 0
      %p84 = por %p82, %p83
      %p85 = scmp.ne.s32.totalorder %s73, %s74
      %p86 = scmp.eq.s32.totalorder %s22, 1
      %p87 = por %p85, %p86
      %p89 = scmp.ne.s32.totalorder %s74, %s88
      %p90 = scmp.eq.s32.totalorder %s22, 0
      %p91 = por %p89, %p90
      %s92 = ssub.s32 %s16, %s23
      %p93 = scmp.eq.s32.totalorder %s92, 0
      %s95 = sadd.s32 %s94, 1
      %s96 = scalar_select %p93, %s94, %s95
      %p99 = pneg %p93
      %p100 = scmp.eq.s32.totalorder %s16, 1
      %p101 = por %p99, %p100
      %p102 = scmp.ne.s32.totalorder %s94, %s97
      %p103 = scmp.eq.s32.totalorder %s16, 0
      %p104 = por %p102, %p103
      %p105 = scmp.ne.s32.totalorder %s94, %s97
      %p106 = scmp.eq.s32.totalorder %s21, 1
      %p107 = por %p105, %p106
      %p108 = scmp.ne.s32.totalorder %s97, %s98
      %p109 = scmp.eq.s32.totalorder %s21, 0
      %p110 = por %p108, %p109
      %p111 = scmp.ne.s32.totalorder %s97, %s98
      %p112 = scmp.eq.s32.totalorder %s22, 1
      %p113 = por %p111, %p112
      %p115 = scmp.ne.s32.totalorder %s98, %s114
      %p116 = scmp.eq.s32.totalorder %s22, 0
      %p117 = por %p115, %p116
      %p118 = scmp.le.s32.totalorder 1, %s16
      %p119 = scmp.lt.s32.totalorder %s16, 3
      %p120 = pnand %p118, %p119
      %p121 = pneg %p120
      // Predicated region
      $region9: #{tpu_custom_call.1} parent=5 // pred_check
        _
      $region10: #{tpu_custom_call.1} parent=5 // pred_check_branch
        %123 = sbr.rel (%p120) target = $region12
      $region11: #{tpu_custom_call.1} parent=5 // pred_region
        %s124 = ssub.s32 %s16, 1
        // Predicated region
        $region13: #{tpu_custom_call.1} parent=11 // pred_check
          %p125 = pneg %p63
        $region14: #{tpu_custom_call.1} parent=11 // pred_check_branch
          %127 = sbr.rel (%p125) target = $region16
        $region15: #{tpu_custom_call.1} parent=11 // pred_region
          %129 = vsyncadd [#allocation6], 0
          %s130 = sshll.u32 %s1, 4
          %s131 = int_to_ptr.hbm [resolvable:$true] %s130
          %s132 = sshll.u32 [#allocation5], 4
          %s133 = int_to_ptr.vmem [resolvable:$true] %s132
          %138 = dma.hbm_to_vmem [thread:$0]  %s131, 1024, %s133, [#allocation6], 64, 64, 4
        $region16: #{tpu_custom_call.1} parent=11 // pred_fallthru
          _
        // Predicated region
        $region17: #{tpu_custom_call.1} parent=11 // pred_check
          %p139 = pneg %p84
        $region18: #{tpu_custom_call.1} parent=11 // pred_check_branch
          %141 = sbr.rel (%p139) target = $region20
        $region19: #{tpu_custom_call.1} parent=11 // pred_region
          _
        $region20: #{tpu_custom_call.1} parent=11 // pred_fallthru
          _
      $region12: #{tpu_custom_call.1} parent=5 // pred_fallthru
        _
      %p142 = scmp.lt.s32.totalorder %s16, 2
      // Predicated region
      $region21: #{tpu_custom_call.1} parent=5 // pred_check
        %p143 = pneg %p142
      $region22: #{tpu_custom_call.1} parent=5 // pred_check_branch
        %145 = sbr.rel (%p143) target = $region24
      $region23: #{tpu_custom_call.1} parent=5 // pred_region
        // Predicated region
        $region25: #{tpu_custom_call.1} parent=23 // pred_check
          %p146 = pneg %p36
        $region26: #{tpu_custom_call.1} parent=23 // pred_check_branch
          %148 = sbr.rel (%p146) target = $region28
        $region27: #{tpu_custom_call.1} parent=23 // pred_region
          %s149 = sand.u32 %s26, 1
          %s150 = scalar_lea.sflag [#allocation3], %s149
          %s151 = sand.u32 %s26, 1
          %s152 = smul.addr %s151, 16
          %s153 = scalar_lea.vmem [#allocation2], %s152
          %s154 = smul.u32 4, %s16
          %s155 = ssub.s32 6, %s154
          %p156 = scmp.lt.s32.totalorder %s155, 4
          %s157 = scalar_select %p156, %s155, 4
          %s158 = smul.u32 4, %s157
          %s159 = ssub.s32 16, %s158
          %s160 = sshll.u32 %s159, 4
          %161 = vsyncadd %s150, %s160
          %p162 = scmp.ne.s32.totalorder 0, %s158
          %s163 = smul.addr %s154, 4
          %s164 = scalar_lea.hbm %s0, %s163
          %s165 = smul.u32 4, %s157
          %s166 = sshll.u32 %s164, 4
          %s167 = int_to_ptr.hbm [resolvable:$true] %s166
          %s168 = sshll.u32 %s153, 4
          %s169 = int_to_ptr.vmem [resolvable:$true] %s168
          %s170 = sshll.u32 %s165, 4
          %174 = dma.hbm_to_vmem [thread:$0]  (%p162), %s167, %s170, %s169, %s150, 64, 64, 4
        $region28: #{tpu_custom_call.1} parent=23 // pred_fallthru
          _
      $region24: #{tpu_custom_call.1} parent=5 // pred_fallthru
        _
      %p175 = scmp.le.s32.totalorder 1, %s16
      %p176 = scmp.lt.s32.totalorder %s16, 3
      %p177 = pnand %p175, %p176
      %p178 = pneg %p177
      // Predicated region
      $region29: #{tpu_custom_call.1} parent=5 // pred_check
        _
      $region30: #{tpu_custom_call.1} parent=5 // pred_check_branch
        %180 = sbr.rel (%p177) target = $region32
      $region31: #{tpu_custom_call.1} parent=5 // pred_region
        %s181 = ssub.s32 %s16, 1
        %s182 = sand.u32 %s29, 1
        %s183 = scalar_lea.sflag [#allocation3], %s182
        %s184 = sand.u32 %s29, 1
        %s185 = smul.addr %s184, 16
        %s186 = scalar_lea.vmem [#allocation2], %s185
        // Predicated region
        $region33: #{tpu_custom_call.1} parent=31 // pred_check
          %p187 = pneg %p42
        $region34: #{tpu_custom_call.1} parent=31 // pred_check_branch
          %189 = sbr.rel (%p187) target = $region36
        $region35: #{tpu_custom_call.1} parent=31 // pred_region
          %191 = dma.done %s183, 256
        $region36: #{tpu_custom_call.1} parent=31 // pred_fallthru
          _
        // Predicated region
        $region37: #{tpu_custom_call.1} parent=31 // pred_check
          %p192 = pneg %p63
        $region38: #{tpu_custom_call.1} parent=31 // pred_check_branch
          %194 = sbr.rel (%p192) target = $region40
        $region39: #{tpu_custom_call.1} parent=31 // pred_region
          %196 = dma.done [#allocation6], 1024
        $region40: #{tpu_custom_call.1} parent=31 // pred_fallthru
          _
        %s197 = sand.u32 %s29, 1
        %s198 = scalar_lea.sflag [#allocation3], %s197
        %s199 = sand.u32 %s29, 1
        %s200 = smul.addr %s199, 16
        %s201 = scalar_lea.vmem [#allocation2], %s200
        %p202 = pneg %p42
        %p203 = pneg %p39
        %p204 = pneg %p63
        %p205 = pneg %p60
        %p206 = pneg %p84
        %p207 = pneg %p81
        %p208 = pneg %p110
        %p209 = pneg %p107
        %s210 = sand.u32 %s97, 1
        %s211 = scalar_lea.sflag [#allocation4], %s210
        %s212 = sand.u32 %s97, 1
        %s213 = smul.addr %s212, 16
        %s214 = scalar_lea.vmem [#allocation7], %s213
        %s215 = smul.u32 4, %s21
        %s216 = ssub.s32 6, %s215
        %p217 = scmp.lt.s32.totalorder %s216, 4
        %s218 = scalar_select %p217, %s216, 4
        %s219 = smul.u32 4, %s218
        %s220 = smul.u32 4, %s21
        %s221 = ssub.s32 6, %s220
        %p222 = scmp.lt.s32.totalorder %s221, 4
        %s223 = scalar_select %p222, %s221, 4
        %s224 = smul.u32 4, %s223
        %v225 = vld [vmem:[%s186] sm:$0xf]
        %v226 = vld [vmem:[%s186 + $0x4] sm:$0xf]
        %v227 = vld [vmem:[%s186 + $0x8] sm:$0xf]
        %v228 = vld [vmem:[%s186 + $0xc] sm:$0xf]
        %v229 = vld [vmem:[#allocation5] sm:$0xf]
        %v230 = vld [vmem:[#allocation5 + $0x4] sm:$0xf]
        %v231 = vld [vmem:[#allocation5 + $0x8] sm:$0xf]
        %v232 = vld [vmem:[#allocation5 + $0xc] sm:$0xf]
        %v233 = vld [vmem:[#allocation5 + $0x10] sm:$0xf]
        %v234 = vld [vmem:[#allocation5 + $0x14] sm:$0xf]
        %v235 = vld [vmem:[#allocation5 + $0x18] sm:$0xf]
        %v236 = vld [vmem:[#allocation5 + $0x1c] sm:$0xf]
        %v237 = vld [vmem:[#allocation5 + $0x20] sm:$0xf]
        %v238 = vld [vmem:[#allocation5 + $0x24] sm:$0xf]
        %v239 = vld [vmem:[#allocation5 + $0x28] sm:$0xf]
        %v240 = vld [vmem:[#allocation5 + $0x2c] sm:$0xf]
        %v241 = vld [vmem:[#allocation5 + $0x30] sm:$0xf]
        %v242 = vld [vmem:[#allocation5 + $0x34] sm:$0xf]
        %v243 = vld [vmem:[#allocation5 + $0x38] sm:$0xf]
        %v244 = vld [vmem:[#allocation5 + $0x3c] sm:$0xf]
        %v245 = vld [vmem:[%s2] sm:$0x1]
        %v247 = vperm.slane %v245, 0
        %v253 = vunpack.c.l.b16 %v225
        %v254 = vunpack.c.l.b16 %v226
        %v255 = vunpack.c.l.b16 %v227
        %v256 = vunpack.c.l.b16 %v228
        %v257 = vpack.c.b16 %v254, %v253
        %v258 = vpack.c.b16 %v256, %v255
        %v277 = vunpack.c.l.b16 %v229
        %v278 = vunpack.c.l.b16 %v230
        %v279 = vunpack.c.l.b16 %v231
        %v280 = vunpack.c.l.b16 %v232
        %v281 = vunpack.c.l.b16 %v233
        %v282 = vunpack.c.l.b16 %v234
        %v283 = vunpack.c.l.b16 %v235
        %v284 = vunpack.c.l.b16 %v236
        %v285 = vunpack.c.l.b16 %v237
        %v286 = vunpack.c.l.b16 %v238
        %v287 = vunpack.c.l.b16 %v239
        %v288 = vunpack.c.l.b16 %v240
        %v289 = vunpack.c.l.b16 %v241
        %v290 = vunpack.c.l.b16 %v242
        %v291 = vunpack.c.l.b16 %v243
        %v292 = vunpack.c.l.b16 %v244
        %v293 = vpack.c.b16 %v278, %v277
        %v294 = vpack.c.b16 %v280, %v279
        %v295 = vpack.c.b16 %v282, %v281
        %v296 = vpack.c.b16 %v284, %v283
        %v297 = vpack.c.b16 %v286, %v285
        %v298 = vpack.c.b16 %v288, %v287
        %v299 = vpack.c.b16 %v290, %v289
        %v300 = vpack.c.b16 %v292, %v291
        %309 = vmatpush.bf16.msra.mxu0 %v300
        %310 = vmatpush.bf16.msra.mxu0 %v299
        %311 = vmatpush.bf16.msra.mxu0 %v298
        %312 = vmatpush.bf16.msra.mxu0 %v297
        %313 = vmatpush.bf16.msra.mxu0 %v296
        %314 = vmatpush.bf16.msra.mxu0 %v295
        %315 = vmatpush.bf16.msra.mxu0 %v294
        %316 = vmatpush.bf16.msra.mxu0 %v293
        %317 = vmatmul.bf16.gmra.mxu0 %v257
        %v318 = vpop.f32.mrf.mxu0
        %v319 = vadd.f32 %v247, %v318
        %v320 = vpop.f32.mrf.mxu0
        %v321 = vadd.f32 %v247, %v320
        %322 = vmatmul.bf16.gmra.mxu0 %v258
        %v323 = vpop.f32.mrf.mxu0
        %v324 = vadd.f32 %v247, %v323
        %v325 = vpop.f32.mrf.mxu0
        %v326 = vadd.f32 %v247, %v325
        %327 = vdwg.mxu0
        %v328 = vpack.c.bf16 %v319, %v319
        %v329 = vpack.c.bf16 %v321, %v321
        %v330 = vpack.c.bf16 %v324, %v324
        %v331 = vpack.c.bf16 %v326, %v326
        %332 = vst [vmem:[%s214] sm:$0xf] %v328
        %333 = vst [vmem:[%s214 + $0x4] sm:$0xf] %v329
        %334 = vst [vmem:[%s214 + $0x8] sm:$0xf] %v330
        %335 = vst [vmem:[%s214 + $0xc] sm:$0xf] %v331
        %s336 = sand.u32 %s97, 1
        %s337 = scalar_lea.sflag [#allocation4], %s336
        %s338 = sand.u32 %s97, 1
        %s339 = smul.addr %s338, 16
        %s340 = scalar_lea.vmem [#allocation7], %s339
        // Predicated region
        $region41: #{tpu_custom_call.1} parent=31 // pred_check
          %p341 = pneg %p107
        $region42: #{tpu_custom_call.1} parent=31 // pred_check_branch
          %343 = sbr.rel (%p341) target = $region44
        $region43: #{tpu_custom_call.1} parent=31 // pred_region
          %s344 = smul.u32 4, %s21
          %s345 = ssub.s32 6, %s344
          %p346 = scmp.lt.s32.totalorder %s345, 4
          %s347 = scalar_select %p346, %s345, 4
          %s348 = smul.u32 4, %s347
          %s349 = ssub.s32 16, %s348
          %s350 = sshll.u32 %s349, 4
          %351 = vsyncadd %s337, %s350
          %p352 = scmp.ne.s32.totalorder 0, %s348
          %s353 = smul.addr %s344, 4
          %s354 = scalar_lea.hbm %s3, %s353
          %s355 = smul.u32 4, %s347
          %s356 = sshll.u32 %s340, 4
          %s357 = int_to_ptr.vmem [resolvable:$true] %s356
          %s358 = sshll.u32 %s354, 4
          %s359 = int_to_ptr.hbm [resolvable:$true] %s358
          %s360 = sshll.u32 %s355, 4
          %364 = dma.vmem_to_hbm [thread:$0]  (%p352), %s357, %s360, %s359, %s337, 64, 64, 4
        $region44: #{tpu_custom_call.1} parent=31 // pred_fallthru
          _
      $region32: #{tpu_custom_call.1} parent=5 // pred_fallthru
        _
      %p365 = scmp.le.s32.totalorder 2, %s16
      // Predicated region
      $region45: #{tpu_custom_call.1} parent=5 // pred_check
        %p366 = pneg %p365
      $region46: #{tpu_custom_call.1} parent=5 // pred_check_branch
        %368 = sbr.rel (%p366) target = $region48
      $region47: #{tpu_custom_call.1} parent=5 // pred_region
        %s369 = ssub.s32 %s16, 2
        // Predicated region
        $region49: #{tpu_custom_call.1} parent=47 // pred_check
          %p370 = pneg %p113
        $region50: #{tpu_custom_call.1} parent=47 // pred_check_branch
          %372 = sbr.rel (%p370) target = $region52
        $region51: #{tpu_custom_call.1} parent=47 // pred_region
          %s373 = sand.u32 %s98, 1
          %s374 = scalar_lea.sflag [#allocation4], %s373
          %s375 = sand.u32 %s98, 1
          %s376 = smul.addr %s375, 16
          %s377 = scalar_lea.vmem [#allocation7], %s376
          %379 = dma.done %s374, 256
        $region52: #{tpu_custom_call.1} parent=47 // pred_fallthru
          _
      $region48: #{tpu_custom_call.1} parent=5 // pred_fallthru
        _
    $region6: #{tpu_custom_call.1} parent=1 // loop_footer
      %s20 = sadd.s32 1, %s16
    $region7: #{tpu_custom_call.1} parent=1 // loop_footer_branch
      %15 = sbr.rel target = $region3
    $region8: #{tpu_custom_call.1} parent=1 // loop_exit
      _
    %380 = vsyncpa [#allocation3], 1
    %s381 = scalar_lea.sflag [#allocation3], 1
    %382 = vsyncpa %s381, 1
    %383 = vsyncpa [#allocation6], 1
    %384 = vsyncpa [#allocation4], 1
    %s385 = scalar_lea.sflag [#allocation4], 1
    %386 = vsyncpa %s385, 1

</llo_original>
